<compile_context>
chip_gen: v6e
topology: v6e:2x2x1
jax: 0.10.0
libtpu: 0.0.40
codegen_flags: <defaults>
</compile_context>

<pallas_src>
import numpy as np
import jax
import jax.numpy as jnp
from jax.experimental import pallas as pl
from jax.experimental.pallas import tpu as pltpu


def _detect_kernel(x_ref, w_ref, b_ref, coef_ref, gxy_ref, raw_ref, dec_ref):
    # 1x1 conv over channels == matmul on the MXU (bf16 in, f32 accumulate).
    v = jnp.dot(w_ref[...], x_ref[...],
                preferred_element_type=jnp.float32) + b_ref[...]
    raw_ref[...] = v                                   # (cout, ts) f32

    # sigmoid: exp goes to the EUP; exact reciprocal keeps verification tight
    # (this head is HBM-write bound, the divide is not on the critical path;
    #  flip approx=True if the VPU ever becomes the bottleneck).
    s = pl.reciprocal(1.0 + jnp.exp(-v), approx=False)

    gx = gxy_ref[0:1, :]                               # (1, ts)
    gy = gxy_ref[1:2, :]                               # (1, ts)

    dec_ref[...] = (coef_ref[:, 0:1] * s               # sigmoid linear term
                    + coef_ref[:, 1:2] * (s * s)       # sigmoid^2 (wh decode)
                    + coef_ref[:, 2:3] * v             # raw linear (landmarks)
                    + coef_ref[:, 3:4] * gx            # grid-x * stride
                    + coef_ref[:, 4:5] * gy            # grid-y * stride
                    + coef_ref[:, 5:6])                # constant (-0.5*stride)


def _build_coefs(anchors_l, stride_l, no, na):
    """Per-output-channel decode coefficients, shape (na*no, 6)."""
    cout = na * no
    coef = np.zeros((cout, 6), np.float32)
    s = float(stride_l)
    for a in range(na):
        aw, ah = float(anchors_l[a][0]), float(anchors_l[a][1])
        for o in range(no):
            c = a * no + o
            if o == 0:                       # x: (sig*2 - 0.5 + gx) * stride
                coef[c, 0] = 2.0 * s; coef[c, 3] = s; coef[c, 5] = -0.5 * s
            elif o == 1:                     # y: (sig*2 - 0.5 + gy) * stride
                coef[c, 0] = 2.0 * s; coef[c, 4] = s; coef[c, 5] = -0.5 * s
            elif o == 2:                     # w: (sig*2)^2 * anchor_w
                coef[c, 1] = 4.0 * aw
            elif o == 3:                     # h: (sig*2)^2 * anchor_h
                coef[c, 1] = 4.0 * ah
            elif o == 4 or o == 15:          # obj / first class score: sigmoid
                coef[c, 0] = 1.0
            elif 5 <= o <= 14:               # 5 landmark (x, y) pairs
                if (o - 5) % 2 == 0:
                    coef[c, 2] = aw; coef[c, 3] = s
                else:
                    coef[c, 2] = ah; coef[c, 4] = s
            # o >= 16: stays all-zero, matching torch.full_like(x, 0) semantics
    return coef


def _spatial_tiling(S, bs, cap=2048):
    """Pick (S_pad, ts): padded spatial extent and lane-tile size.

    Guarantees: ts is a multiple of 128 or the full extent; per-step VMEM slab
    is bounded (safe under v7x's 64 MiB / 32 MiB default scoped limit); the
    grid keeps >=2 steps whenever possible so both v7x TensorCores are used.
    """
    if S % 128 != 0:
        if S <= cap:
            return S, S                      # tiny level: full-extent lane block
        S_pad = ((S + 127) // 128) * 128     # pad, slice garbage off in wrapper
    else:
        S_pad = S
    ts = min(cap, S_pad)
    while S_pad % ts:
        ts -= 128
    if bs * (S_pad // ts) < 2 and ts % 256 == 0:
        ts //= 2                             # never collapse to a 1-step grid
    return S_pad, ts


def detect_level(x_nchw, w, b, anchors_l, stride_l, no, na, lane_tile_cap=2048):
    bs, cin, ny, nx = x_nchw.shape
    cout = no * na
    S = ny * nx
    S_pad, ts = _spatial_tiling(S, bs, cap=lane_tile_cap)

    # NCHW read directly: (bs, cin, ny*nx) -- free reshape, no transpose.
    x3 = x_nchw.reshape(bs, cin, S)
    if S_pad != S:
        x3 = jnp.pad(x3, ((0, 0), (0, 0), (0, S_pad - S)))
    x3 = x3.astype(jnp.bfloat16)                               # bf16 MXU inputs
    w2 = w.reshape(cout, cin).astype(jnp.bfloat16)             # (cout, cin)
    bias = b.reshape(cout, 1).astype(jnp.float32)              # (cout, 1)
    coef = jnp.asarray(_build_coefs(anchors_l, stride_l, no, na))  # (cout, 6)

    # Lane-dense grid-coordinate table, shared across the batch: (2, S_pad).
    p = np.arange(S_pad)
    gxy = jnp.asarray(np.stack([(p % nx).astype(np.float32),
                                (p // nx).astype(np.float32)], axis=0))

    grid = (bs, S_pad // ts)

    # NOTE: w2 / bias / coef / gxy are grid-invariant and tiny; their default
    # double-buffers cost negligible VMEM, so pipeline_mode overrides are not
    # needed even under v7x's 64 MiB.
    raw, dec = pl.pallas_call(
        _detect_kernel,
        out_shape=(jax.ShapeDtypeStruct((bs, cout, S_pad), jnp.float32),
                   jax.ShapeDtypeStruct((bs, cout, S_pad), jnp.float32)),
        grid_spec=pltpu.PrefetchScalarGridSpec(
            num_scalar_prefetch=0,
            grid=grid,
            in_specs=[
                pl.BlockSpec((None, cin, ts), lambda bb, j: (bb, 0, j)),
                pl.BlockSpec((cout, cin), lambda bb, j: (0, 0)),
                pl.BlockSpec((cout, 1), lambda bb, j: (0, 0)),
                pl.BlockSpec((cout, 6), lambda bb, j: (0, 0)),
                pl.BlockSpec((2, ts), lambda bb, j: (0, j)),
            ],
            out_specs=[
                pl.BlockSpec((None, cout, ts), lambda bb, j: (bb, 0, j)),
                pl.BlockSpec((None, cout, ts), lambda bb, j: (bb, 0, j)),
            ],
        ),
        compiler_params=pltpu.CompilerParams(
            dimension_semantics=("parallel", "parallel")),
    )(x3, w2, bias, coef, gxy)

    raw = raw[:, :, :S]
    dec = dec[:, :, :S]
    # Conv output in PyTorch's permuted layout: (bs, na, ny, nx, no)
    x_out = jnp.transpose(raw.reshape(bs, na, no, ny, nx), (0, 1, 3, 4, 2))
    # Decoded predictions flattened per level: (bs, na*ny*nx, no)
    z = jnp.transpose(dec.reshape(bs, na, no, ny, nx),
                      (0, 1, 3, 4, 2)).reshape(bs, na * ny * nx, no)
    return x_out, z


class DetectPallas:
    """Inference-mode Detect head (training path would just return the conv outputs)."""

    def __init__(self, nc, anchors, ch, strides, key):
        self.nc = nc
        self.no = nc + 5 + 10
        self.nl = len(anchors)
        self.na = len(anchors[0]) // 2
        self.anchors = np.asarray(anchors, np.float32).reshape(self.nl, self.na, 2)
        self.strides = [float(s) for s in strides]
        self.weights, self.biases = [], []
        cout = self.no * self.na
        for i, cin in enumerate(ch):
            key, kw, kb = jax.random.split(key, 3)
            self.weights.append(0.1 * jax.random.normal(kw, (cout, cin, 1, 1), jnp.float32))
            self.biases.append(0.1 * jax.random.normal(kb, (cout,), jnp.float32))

    def __call__(self, x_list):
        z, x_outs = [], []
        for i in range(self.nl):
            x_out, z_i = detect_level(x_list[i], self.weights[i], self.biases[i],
                                      self.anchors[i], self.strides[i], self.no, self.na)
            x_outs.append(x_out)
            z.append(z_i)
        return jnp.concatenate(z, axis=1), x_outs


def detect_reference(x_list, weights, biases, anchors, strides, nc):
    """Pure-jnp mirror of the PyTorch forward (inference branch) for verification."""
    no = nc + 15
    nl = len(anchors)
    na = anchors.shape[1]
    z, x_outs = [], []
    for i in range(nl):
        xi = x_list[i].astype(jnp.float32)
        b, cin, ny, nx = xi.shape
        w = weights[i].reshape(no * na, cin)
        conv = jnp.einsum('bchw,oc->bohw', xi, w) + biases[i].reshape(1, -1, 1, 1)
        xi = jnp.transpose(conv.reshape(b, na, no, ny, nx), (0, 1, 3, 4, 2))
        x_outs.append(xi)
        yv, xv = np.meshgrid(np.arange(ny), np.arange(nx), indexing='ij')
        grid = np.stack([xv, yv], 2).reshape(1, 1, ny, nx, 2).astype(np.float32)
        ag = anchors[i].reshape(1, na, 1, 1, 2)
        s = strides[i]
        sig = 1.0 / (1.0 + jnp.exp(-xi))
        y = jnp.zeros_like(xi)
        y = y.at[..., 0:2].set((sig[..., 0:2] * 2.0 - 0.5 + grid) * s)
        y = y.at[..., 2:4].set((sig[..., 2:4] * 2.0) ** 2 * ag)
        y = y.at[..., 4].set(sig[..., 4])
        y = y.at[..., 15].set(sig[..., 15])
        for k in range(5):
            y = y.at[..., 5 + 2 * k:7 + 2 * k].set(xi[..., 5 + 2 * k:7 + 2 * k] * ag + grid * s)
        z.append(y.reshape(b, -1, no))
    return jnp.concatenate(z, 1), x_outs


if __name__ == "__main__":
    key = jax.random.PRNGKey(0)

    nc = 1                                            # face detection -> no = 16
    anchors = [(4, 5, 8, 10, 13, 16),
               (23, 29, 43, 55, 73, 105)]             # nl = 2, na = 3
    ch = [4, 8]
    strides = [8.0, 16.0]
    bs = 2
    spatials = [(8, 8), (4, 4)]

    key, k0, k1, kp = jax.random.split(key, 4)
    x_list = [
        jax.random.normal(k0, (bs, ch[0], spatials[0][0], spatials[0][1]), jnp.float32),
        jax.random.normal(k1, (bs, ch[1], spatials[1][0], spatials[1][1]), jnp.float32),
    ]

    detect = DetectPallas(nc, anchors, ch, strides, kp)

    z_cat, x_outs = detect(x_list)
    jax.block_until_ready(z_cat)
    for xo in x_outs:
        jax.block_until_ready(xo)

    # Verify against a pure-JAX reference of the PyTorch forward. The kernel
    # feeds bf16 activations/weights to the MXU (f32 accumulate), so the
    # reference sees the same bf16-quantized inputs; remaining differences are
    # only accumulation-order / transcendental ulps.
    x_q = [x.astype(jnp.bfloat16).astype(jnp.float32) for x in x_list]
    w_q = [w.astype(jnp.bfloat16).astype(jnp.float32) for w in detect.weights]
    z_ref, x_ref = detect_reference(x_q, w_q, detect.biases,
                                    detect.anchors, detect.strides, nc)
    np.testing.assert_allclose(np.asarray(z_cat), np.asarray(z_ref), rtol=1e-3, atol=1e-3)
    for a, b in zip(x_outs, x_ref):
        np.testing.assert_allclose(np.asarray(a), np.asarray(b), rtol=1e-3, atol=1e-3)

    print("KERNEL_OK")
</pallas_src>

<mosaic_0001>
module attributes {stable_mosaic.version = 11 : i64} {
  func.func @_detect_kernel(%arg0: i32, %arg1: i32, %arg2: memref<1x4x64xbf16, #tpu.memory_space<vmem>>, %arg3: memref<48x4xbf16, #tpu.memory_space<vmem>>, %arg4: memref<48x1xf32, #tpu.memory_space<vmem>>, %arg5: memref<48x6xf32, #tpu.memory_space<vmem>>, %arg6: memref<2x64xf32, #tpu.memory_space<vmem>>, %arg7: memref<1x48x64xf32, #tpu.memory_space<vmem>>, %arg8: memref<1x48x64xf32, #tpu.memory_space<vmem>>) attributes {dimension_semantics = [#tpu.dimension_semantics<parallel>, #tpu.dimension_semantics<parallel>], iteration_bounds = array<i64: 2, 1>, scalar_prefetch = 0 : i64, scratch_operands = 0 : i64, tpu.core_type = #tpu.core_type<tc>, window_params = [{transform_indices = @transform_0, window_bounds = array<i64: 1, 4, 64>}, {pipeline_mode = #tpu.pipeline_mode<synchronous>, transform_indices = @transform_1, window_bounds = array<i64: 48, 4>}, {pipeline_mode = #tpu.pipeline_mode<synchronous>, transform_indices = @transform_2, window_bounds = array<i64: 48, 1>}, {pipeline_mode = #tpu.pipeline_mode<synchronous>, transform_indices = @transform_3, window_bounds = array<i64: 48, 6>}, {transform_indices = @transform_4, window_bounds = array<i64: 2, 64>}, {transform_indices = @transform_5, window_bounds = array<i64: 1, 48, 64>}, {transform_indices = @transform_6, window_bounds = array<i64: 1, 48, 64>}]} {
    %c0 = arith.constant 0 : index
    %c0_0 = arith.constant 0 : index
    %0 = vector.load %arg3[%c0, %c0_0] : memref<48x4xbf16, #tpu.memory_space<vmem>>, vector<48x4xbf16>
    %c0_1 = arith.constant 0 : index
    %c0_2 = arith.constant 0 : index
    %c0_3 = arith.constant 0 : index
    %1 = vector.load %arg2[%c0_1, %c0_2, %c0_3] : memref<1x4x64xbf16, #tpu.memory_space<vmem>>, vector<1x4x64xbf16>
    %2 = vector.shape_cast %1 : vector<1x4x64xbf16> to vector<4x64xbf16>
    %cst = arith.constant dense<0.000000e+00> : vector<48x64xf32>
    %3 = tpu.matmul %0, %2, %cst {dimension_numbers = #tpu.dot_dimension_numbers<[1], [0], [0], [1], [0, 0, 1, 1], [], []>} : vector<48x4xbf16>, vector<4x64xbf16>, vector<48x64xf32> -> vector<48x64xf32>
    %c0_4 = arith.constant 0 : index
    %c0_5 = arith.constant 0 : index
    %4 = vector.load %arg4[%c0_4, %c0_5] : memref<48x1xf32, #tpu.memory_space<vmem>>, vector<48x1xf32>
    %5 = vector.broadcast %4 : vector<48x1xf32> to vector<48x64xf32>
    %6 = arith.addf %3, %5 : vector<48x64xf32>
    %c0_6 = arith.constant 0 : index
    %c0_7 = arith.constant 0 : index
    %c0_8 = arith.constant 0 : index
    %7 = vector.load %arg7[%c0_6, %c0_7, %c0_8] : memref<1x48x64xf32, #tpu.memory_space<vmem>>, vector<1x48x64xf32>
    %8 = vector.shape_cast %7 : vector<1x48x64xf32> to vector<48x64xf32>
    %9 = vector.shape_cast %6 : vector<48x64xf32> to vector<1x48x64xf32>
    tpu.vector_store %arg7[%c0_6, %c0_7, %c0_8], %9 {strides = array<i32>} : memref<1x48x64xf32, #tpu.memory_space<vmem>>, vector<1x48x64xf32>,
    %cst_9 = arith.constant 0.000000e+00 : f32
    %10 = vector.broadcast %cst_9 : f32 to vector<48x64xf32>
    %11 = arith.subf %10, %6 : vector<48x64xf32>
    %12 = math.exp %11 : vector<48x64xf32>
    %cst_10 = arith.constant 1.000000e+00 : f32
    %13 = vector.broadcast %cst_10 : f32 to vector<48x64xf32>
    %14 = arith.addf %13, %12 : vector<48x64xf32>
    %15 = tpu.reciprocal %14 : vector<48x64xf32> -> vector<48x64xf32>
    %c0_11 = arith.constant 0 : index
    %c0_12 = arith.constant 0 : index
    %16 = vector.load %arg6[%c0_11, %c0_12] : memref<2x64xf32, #tpu.memory_space<vmem>>, vector<1x64xf32>
    %c1 = arith.constant 1 : index
    %c0_13 = arith.constant 0 : index
    %17 = vector.load %arg6[%c1, %c0_13] : memref<2x64xf32, #tpu.memory_space<vmem>>, vector<1x64xf32>
    %c0_14 = arith.constant 0 : index
    %c0_15 = arith.constant 0 : index
    %18 = vector.load %arg5[%c0_14, %c0_15] : memref<48x6xf32, #tpu.memory_space<vmem>>, vector<48x1xf32>
    %19 = vector.broadcast %18 : vector<48x1xf32> to vector<48x64xf32>
    %20 = arith.mulf %19, %15 : vector<48x64xf32>
    %c0_16 = arith.constant 0 : index
    %c1_17 = arith.constant 1 : index
    %21 = vector.load %arg5[%c0_16, %c1_17] : memref<48x6xf32, #tpu.memory_space<vmem>>, vector<48x1xf32>
    %22 = arith.mulf %15, %15 : vector<48x64xf32>
    %23 = vector.broadcast %21 : vector<48x1xf32> to vector<48x64xf32>
    %24 = arith.mulf %23, %22 : vector<48x64xf32>
    %25 = arith.addf %20, %24 : vector<48x64xf32>
    %c0_18 = arith.constant 0 : index
    %c2 = arith.constant 2 : index
    %26 = vector.load %arg5[%c0_18, %c2] : memref<48x6xf32, #tpu.memory_space<vmem>>, vector<48x1xf32>
    %27 = vector.broadcast %26 : vector<48x1xf32> to vector<48x64xf32>
    %28 = arith.mulf %27, %6 : vector<48x64xf32>
    %29 = arith.addf %25, %28 : vector<48x64xf32>
    %c0_19 = arith.constant 0 : index
    %c3 = arith.constant 3 : index
    %30 = vector.load %arg5[%c0_19, %c3] : memref<48x6xf32, #tpu.memory_space<vmem>>, vector<48x1xf32>
    %31 = vector.broadcast %30 : vector<48x1xf32> to vector<48x64xf32>
    %32 = vector.broadcast %16 : vector<1x64xf32> to vector<48x64xf32>
    %33 = arith.mulf %31, %32 : vector<48x64xf32>
    %34 = arith.addf %29, %33 : vector<48x64xf32>
    %c0_20 = arith.constant 0 : index
    %c4 = arith.constant 4 : index
    %35 = vector.load %arg5[%c0_20, %c4] : memref<48x6xf32, #tpu.memory_space<vmem>>, vector<48x1xf32>
    %36 = vector.broadcast %35 : vector<48x1xf32> to vector<48x64xf32>
    %37 = vector.broadcast %17 : vector<1x64xf32> to vector<48x64xf32>
    %38 = arith.mulf %36, %37 : vector<48x64xf32>
    %39 = arith.addf %34, %38 : vector<48x64xf32>
    %c0_21 = arith.constant 0 : index
    %c5 = arith.constant 5 : index
    %40 = vector.load %arg5[%c0_21, %c5] : memref<48x6xf32, #tpu.memory_space<vmem>>, vector<48x1xf32>
    %41 = vector.broadcast %40 : vector<48x1xf32> to vector<48x64xf32>
    %42 = arith.addf %39, %41 : vector<48x64xf32>
    %c0_22 = arith.constant 0 : index
    %c0_23 = arith.constant 0 : index
    %c0_24 = arith.constant 0 : index
    %43 = vector.load %arg8[%c0_22, %c0_23, %c0_24] : memref<1x48x64xf32, #tpu.memory_space<vmem>>, vector<1x48x64xf32>
    %44 = vector.shape_cast %43 : vector<1x48x64xf32> to vector<48x64xf32>
    %45 = vector.shape_cast %42 : vector<48x64xf32> to vector<1x48x64xf32>
    tpu.vector_store %arg8[%c0_22, %c0_23, %c0_24], %45 {strides = array<i32>} : memref<1x48x64xf32, #tpu.memory_space<vmem>>, vector<1x48x64xf32>,
    return
  }
  func.func @transform_0(%arg0: i32, %arg1: i32) -> (i32, i32, i32) {
    %c0_i32 = arith.constant 0 : i32
    %c0_i32_0 = arith.constant 0 : i32
    return %arg0, %c0_i32, %arg1 : i32, i32, i32
  }
  func.func @transform_1(%arg0: i32, %arg1: i32) -> (i32, i32) {
    %c0_i32 = arith.constant 0 : i32
    %c0_i32_0 = arith.constant 0 : i32
    %c0_i32_1 = arith.constant 0 : i32
    return %c0_i32, %c0_i32_0 : i32, i32
  }
  func.func @transform_2(%arg0: i32, %arg1: i32) -> (i32, i32) {
    %c0_i32 = arith.constant 0 : i32
    %c0_i32_0 = arith.constant 0 : i32
    %c0_i32_1 = arith.constant 0 : i32
    return %c0_i32, %c0_i32_0 : i32, i32
  }
  func.func @transform_3(%arg0: i32, %arg1: i32) -> (i32, i32) {
    %c0_i32 = arith.constant 0 : i32
    %c0_i32_0 = arith.constant 0 : i32
    %c0_i32_1 = arith.constant 0 : i32
    return %c0_i32, %c0_i32_0 : i32, i32
  }
  func.func @transform_4(%arg0: i32, %arg1: i32) -> (i32, i32) {
    %c0_i32 = arith.constant 0 : i32
    %c0_i32_0 = arith.constant 0 : i32
    return %c0_i32, %arg1 : i32, i32
  }
  func.func @transform_5(%arg0: i32, %arg1: i32) -> (i32, i32, i32) {
    %c0_i32 = arith.constant 0 : i32
    %c0_i32_0 = arith.constant 0 : i32
    return %arg0, %c0_i32, %arg1 : i32, i32, i32
  }
  func.func @transform_6(%arg0: i32, %arg1: i32) -> (i32, i32, i32) {
    %c0_i32 = arith.constant 0 : i32
    %c0_i32_0 = arith.constant 0 : i32
    return %arg0, %c0_i32, %arg1 : i32, i32, i32
  }
}

</mosaic_0001>

<llo_original>
// kernel: tpu_custom_call.1
$region0: #{tpu_custom_call.1}
  #allocation0 [shape = 'u32[]', space=smem, size = 0x4, offset = 0x4, fixed_abs, tag = 'smem constant byte address 0x4 - core index']
  #allocation1 [shape = 'u32[144,128]{1,0:T(1,128)}', space=vmem, size = 0x12000, scoped, tag = 'internal scratch']
  %s0 = inlined_call_operand.vmem [shape: bf16[2,4,64], index: 0, kind: input, shape index: {}]
  %s1 = inlined_call_operand.vmem [shape: bf16[48,4], index: 1, kind: input, shape index: {}]
  %s2 = inlined_call_operand.vmem [shape: f32[48,1], index: 2, kind: input, shape index: {}]
  %s3 = inlined_call_operand.vmem [shape: f32[48,6], index: 3, kind: input, shape index: {}]
  %s4 = inlined_call_operand.vmem [shape: f32[2,64], index: 4, kind: input, shape index: {}]
  %s5 = inlined_call_operand.hbm [shape: f32[2,48,64], index: 5, kind: output, shape index: {0}]
  %s6 = inlined_call_operand.hbm [shape: f32[2,48,64], index: 6, kind: output, shape index: {1}]
  %7 = xla_tuple %s5, %s6
  %s8 = sld [smem:[#allocation0]]
  $region61: #{tpu_custom_call.1} parent=0
    _
  %s10 = ssub.s32 1, %s8
  %s11 = scalar_select 0, %s10, %s8
  $region1: #{tpu_custom_call.1} parent=0
    #allocation2 [shape = 'u8[49152]{0}', space=vmem, size = 0xc000, scoped, tag = 'output window, operand 0']
    #allocation3 [shape = 's32[2]{0}', space=sflag, size = 0x8, scoped, tag = 'scoped memory for tpu_custom_call.1']
    #allocation4 [shape = 'u8[49152]{0}', space=vmem, size = 0xc000, scoped, tag = 'output window, operand 1']
    #allocation5 [shape = 's32[2]{0}', space=sflag, size = 0x8, scoped, tag = 'scoped memory for tpu_custom_call.1']
    %12 = vsyncpa [#allocation3], 0
    %s13 = scalar_lea.sflag [#allocation3], 1
    %14 = vsyncpa %s13, 0
    %15 = vsyncpa [#allocation5], 0
    %s16 = scalar_lea.sflag [#allocation5], 1
    %17 = vsyncpa %s16, 0
    loop: start=0, step=1, limit=4
    $region2: #{tpu_custom_call.1} parent=1 // loop_pre_header
      _
    $region3: #{tpu_custom_call.1} parent=1 // loop_header
      %s19 = sphi 0, %s23
      %p20 = scmp.ge.s32.totalorder %s19, 4
      %s26 = sphi 0, %s38
      %s27 = sphi 0, %s34
      %s28 = sphi 0, %s26
      %s29 = sphi 0, %s27
      %s30 = sphi 0, %s28
      %s31 = sphi 0, %s29
      %s43 = sphi 0, %s45
      %s46 = sphi 0, %s43
      %s47 = sphi 0, %s46
      %s63 = sphi 0, %s47
      %s67 = sphi 0, %s67
      %s69 = sphi 0, %s67
      %s70 = sphi 0, %s69
      %s84 = sphi 0, %s70
      %s88 = sphi 0, %s88
      %s90 = sphi 0, %s88
      %s91 = sphi 0, %s90
      %s105 = sphi 0, %s91
      %s109 = sphi 0, %s109
      %s111 = sphi 0, %s109
      %s112 = sphi 0, %s111
      %s126 = sphi 0, %s112
      %s132 = sphi 0, %s134
      %s135 = sphi 0, %s132
      %s136 = sphi 0, %s135
      %s152 = sphi 0, %s136
      %s160 = sphi 0, %s162
      %s163 = sphi 0, %s160
      %s164 = sphi 0, %s163
      %s180 = sphi 0, %s164
      %s188 = sphi 0, %s190
      %s191 = sphi 0, %s188
      %s192 = sphi 0, %s191
      %s208 = sphi 0, %s192
    $region4: #{tpu_custom_call.1} parent=1 // loop_header_branch
      %22 = sbr.rel (%p20) target = $region8
    $region5: #{tpu_custom_call.1} parent=1 // loop_body
      %s24 = ssub.s32 %s19, 1
      %s25 = ssub.s32 %s19, 2
      %s32 = sadd.s32 1, %s27
      %p33 = scmp.ge.s32.totalorder %s32, 1
      %s34 = scalar_select %p33, 0, %s32
      %s35 = sadd.s32 1, %s26
      %s36 = scalar_select %p33, %s35, %s26
      %p37 = scmp.ge.s32.totalorder %s36, 2
      %s38 = scalar_select %p37, 0, %s36
      %s39 = ssub.s32 %s26, %s38
      %s40 = ssub.s32 %s27, %s34
      %s41 = sor.u32 %s39, %s40
      %p42 = scmp.eq.s32.totalorder %s41, 0
      %s44 = sadd.s32 %s43, 1
      %s45 = scalar_select %p42, %s43, %s44
      %p48 = pneg %p42
      %p49 = scmp.eq.s32.totalorder %s19, 1
      %p50 = por %p48, %p49
      %p51 = scmp.ne.s32.totalorder %s43, %s46
      %p52 = scmp.eq.s32.totalorder %s19, 0
      %p53 = por %p51, %p52
      %p54 = scmp.ne.s32.totalorder %s43, %s46
      %p55 = scmp.eq.s32.totalorder %s24, 1
      %p56 = por %p54, %p55
      %p57 = scmp.ne.s32.totalorder %s46, %s47
      %p58 = scmp.eq.s32.totalorder %s24, 0
      %p59 = por %p57, %p58
      %p60 = scmp.ne.s32.totalorder %s46, %s47
      %p61 = scmp.eq.s32.totalorder %s25, 1
      %p62 = por %p60, %p61
      %p64 = scmp.ne.s32.totalorder %s47, %s63
      %p65 = scmp.eq.s32.totalorder %s25, 0
      %p66 = por %p64, %p65
      %s68 = sadd.s32 %s67, 1
      %p71 = scmp.eq.s32.totalorder %s19, 1
      %p72 = scmp.ne.s32.totalorder %s67, %s69
      %p73 = scmp.eq.s32.totalorder %s19, 0
      %p74 = por %p72, %p73
      %p75 = scmp.ne.s32.totalorder %s67, %s69
      %p76 = scmp.eq.s32.totalorder %s24, 1
      %p77 = por %p75, %p76
      %p78 = scmp.ne.s32.totalorder %s69, %s70
      %p79 = scmp.eq.s32.totalorder %s24, 0
      %p80 = por %p78, %p79
      %p81 = scmp.ne.s32.totalorder %s69, %s70
      %p82 = scmp.eq.s32.totalorder %s25, 1
      %p83 = por %p81, %p82
      %p85 = scmp.ne.s32.totalorder %s70, %s84
      %p86 = scmp.eq.s32.totalorder %s25, 0
      %p87 = por %p85, %p86
      %s89 = sadd.s32 %s88, 1
      %p92 = scmp.eq.s32.totalorder %s19, 1
      %p93 = scmp.ne.s32.totalorder %s88, %s90
      %p94 = scmp.eq.s32.totalorder %s19, 0
      %p95 = por %p93, %p94
      %p96 = scmp.ne.s32.totalorder %s88, %s90
      %p97 = scmp.eq.s32.totalorder %s24, 1
      %p98 = por %p96, %p97
      %p99 = scmp.ne.s32.totalorder %s90, %s91
      %p100 = scmp.eq.s32.totalorder %s24, 0
      %p101 = por %p99, %p100
      %p102 = scmp.ne.s32.totalorder %s90, %s91
      %p103 = scmp.eq.s32.totalorder %s25, 1
      %p104 = por %p102, %p103
      %p106 = scmp.ne.s32.totalorder %s91, %s105
      %p107 = scmp.eq.s32.totalorder %s25, 0
      %p108 = por %p106, %p107
      %s110 = sadd.s32 %s109, 1
      %p113 = scmp.eq.s32.totalorder %s19, 1
      %p114 = scmp.ne.s32.totalorder %s109, %s111
      %p115 = scmp.eq.s32.totalorder %s19, 0
      %p116 = por %p114, %p115
      %p117 = scmp.ne.s32.totalorder %s109, %s111
      %p118 = scmp.eq.s32.totalorder %s24, 1
      %p119 = por %p117, %p118
      %p120 = scmp.ne.s32.totalorder %s111, %s112
      %p121 = scmp.eq.s32.totalorder %s24, 0
      %p122 = por %p120, %p121
      %p123 = scmp.ne.s32.totalorder %s111, %s112
      %p124 = scmp.eq.s32.totalorder %s25, 1
      %p125 = por %p123, %p124
      %p127 = scmp.ne.s32.totalorder %s112, %s126
      %p128 = scmp.eq.s32.totalorder %s25, 0
      %p129 = por %p127, %p128
      %s130 = ssub.s32 %s27, %s34
      %p131 = scmp.eq.s32.totalorder %s130, 0
      %s133 = sadd.s32 %s132, 1
      %s134 = scalar_select %p131, %s132, %s133
      %p137 = pneg %p131
      %p138 = scmp.eq.s32.totalorder %s19, 1
      %p139 = por %p137, %p138
      %p140 = scmp.ne.s32.totalorder %s132, %s135
      %p141 = scmp.eq.s32.totalorder %s19, 0
      %p142 = por %p140, %p141
      %p143 = scmp.ne.s32.totalorder %s132, %s135
      %p144 = scmp.eq.s32.totalorder %s24, 1
      %p145 = por %p143, %p144
      %p146 = scmp.ne.s32.totalorder %s135, %s136
      %p147 = scmp.eq.s32.totalorder %s24, 0
      %p148 = por %p146, %p147
      %p149 = scmp.ne.s32.totalorder %s135, %s136
      %p150 = scmp.eq.s32.totalorder %s25, 1
      %p151 = por %p149, %p150
      %p153 = scmp.ne.s32.totalorder %s136, %s152
      %p154 = scmp.eq.s32.totalorder %s25, 0
      %p155 = por %p153, %p154
      %s156 = ssub.s32 %s26, %s38
      %s157 = ssub.s32 %s27, %s34
      %s158 = sor.u32 %s156, %s157
      %p159 = scmp.eq.s32.totalorder %s158, 0
      %s161 = sadd.s32 %s160, 1
      %s162 = scalar_select %p159, %s160, %s161
      %p165 = pneg %p159
      %p166 = scmp.eq.s32.totalorder %s19, 1
      %p167 = por %p165, %p166
      %p168 = scmp.ne.s32.totalorder %s160, %s163
      %p169 = scmp.eq.s32.totalorder %s19, 0
      %p170 = por %p168, %p169
      %p171 = scmp.ne.s32.totalorder %s160, %s163
      %p172 = scmp.eq.s32.totalorder %s24, 1
      %p173 = por %p171, %p172
      %p174 = scmp.ne.s32.totalorder %s163, %s164
      %p175 = scmp.eq.s32.totalorder %s24, 0
      %p176 = por %p174, %p175
      %p177 = scmp.ne.s32.totalorder %s163, %s164
      %p178 = scmp.eq.s32.totalorder %s25, 1
      %p179 = por %p177, %p178
      %p181 = scmp.ne.s32.totalorder %s164, %s180
      %p182 = scmp.eq.s32.totalorder %s25, 0
      %p183 = por %p181, %p182
      %s184 = ssub.s32 %s26, %s38
      %s185 = ssub.s32 %s27, %s34
      %s186 = sor.u32 %s184, %s185
      %p187 = scmp.eq.s32.totalorder %s186, 0
      %s189 = sadd.s32 %s188, 1
      %s190 = scalar_select %p187, %s188, %s189
      %p193 = pneg %p187
      %p194 = scmp.eq.s32.totalorder %s19, 1
      %p195 = por %p193, %p194
      %p196 = scmp.ne.s32.totalorder %s188, %s191
      %p197 = scmp.eq.s32.totalorder %s19, 0
      %p198 = por %p196, %p197
      %p199 = scmp.ne.s32.totalorder %s188, %s191
      %p200 = scmp.eq.s32.totalorder %s24, 1
      %p201 = por %p199, %p200
      %p202 = scmp.ne.s32.totalorder %s191, %s192
      %p203 = scmp.eq.s32.totalorder %s24, 0
      %p204 = por %p202, %p203
      %p205 = scmp.ne.s32.totalorder %s191, %s192
      %p206 = scmp.eq.s32.totalorder %s25, 1
      %p207 = por %p205, %p206
      %p209 = scmp.ne.s32.totalorder %s192, %s208
      %p210 = scmp.eq.s32.totalorder %s25, 0
      %p211 = por %p209, %p210
      %p212 = scmp.le.s32.totalorder 1, %s19
      %p213 = scmp.lt.s32.totalorder %s19, 3
      %p214 = pnand %p212, %p213
      %p215 = pneg %p214
      // Predicated region
      $region9: #{tpu_custom_call.1} parent=5 // pred_check
        _
      $region10: #{tpu_custom_call.1} parent=5 // pred_check_branch
        %217 = sbr.rel (%p214) target = $region12
      $region11: #{tpu_custom_call.1} parent=5 // pred_region
        %s218 = ssub.s32 %s19, 1
        // Predicated region
        $region13: #{tpu_custom_call.1} parent=11 // pred_check
          %p219 = pneg %p80
        $region14: #{tpu_custom_call.1} parent=11 // pred_check_branch
          %221 = sbr.rel (%p219) target = $region16
        $region15: #{tpu_custom_call.1} parent=11 // pred_region
          _
        $region16: #{tpu_custom_call.1} parent=11 // pred_fallthru
          _
        // Predicated region
        $region17: #{tpu_custom_call.1} parent=11 // pred_check
          %p222 = pneg %p101
        $region18: #{tpu_custom_call.1} parent=11 // pred_check_branch
          %224 = sbr.rel (%p222) target = $region20
        $region19: #{tpu_custom_call.1} parent=11 // pred_region
          _
        $region20: #{tpu_custom_call.1} parent=11 // pred_fallthru
          _
        // Predicated region
        $region21: #{tpu_custom_call.1} parent=11 // pred_check
          %p225 = pneg %p122
        $region22: #{tpu_custom_call.1} parent=11 // pred_check_branch
          %227 = sbr.rel (%p225) target = $region24
        $region23: #{tpu_custom_call.1} parent=11 // pred_region
          _
        $region24: #{tpu_custom_call.1} parent=11 // pred_fallthru
          _
        // Predicated region
        $region25: #{tpu_custom_call.1} parent=11 // pred_check
          %p228 = pneg %p148
        $region26: #{tpu_custom_call.1} parent=11 // pred_check_branch
          %230 = sbr.rel (%p228) target = $region28
        $region27: #{tpu_custom_call.1} parent=11 // pred_region
          %p231 = scmp.lt.s32.totalorder %s29, 0
          %s232 = scalar_select %p231, %s29, 0
          %s233 = smul.addr %s232, 2
          %s234 = scalar_lea.vmem %s4, %s233
        $region28: #{tpu_custom_call.1} parent=11 // pred_fallthru
          _
      $region12: #{tpu_custom_call.1} parent=5 // pred_fallthru
        _
      %p235 = scmp.lt.s32.totalorder %s19, 2
      // Predicated region
      $region29: #{tpu_custom_call.1} parent=5 // pred_check
        %p236 = pneg %p235
      $region30: #{tpu_custom_call.1} parent=5 // pred_check_branch
        %238 = sbr.rel (%p236) target = $region32
      $region31: #{tpu_custom_call.1} parent=5 // pred_region
        // Predicated region
        $region33: #{tpu_custom_call.1} parent=31 // pred_check
          %p239 = pneg %p53
        $region34: #{tpu_custom_call.1} parent=31 // pred_check_branch
          %241 = sbr.rel (%p239) target = $region36
        $region35: #{tpu_custom_call.1} parent=31 // pred_region
          %p242 = scmp.lt.s32.totalorder %s26, 1
          %s243 = scalar_select %p242, %s26, 1
          %p244 = scmp.lt.s32.totalorder %s27, 0
          %s245 = scalar_select %p244, %s27, 0
          %s246 = sadd.s32 %s245, %s243
          %s247 = smul.addr %s246, 2
          %s248 = scalar_lea.vmem %s0, %s247
        $region36: #{tpu_custom_call.1} parent=31 // pred_fallthru
          _
      $region32: #{tpu_custom_call.1} parent=5 // pred_fallthru
        _
      %p249 = scmp.le.s32.totalorder 1, %s19
      %p250 = scmp.lt.s32.totalorder %s19, 3
      %p251 = pnand %p249, %p250
      %p252 = pneg %p251
      // Predicated region
      $region37: #{tpu_custom_call.1} parent=5 // pred_check
        _
      $region38: #{tpu_custom_call.1} parent=5 // pred_check_branch
        %254 = sbr.rel (%p251) target = $region40
      $region39: #{tpu_custom_call.1} parent=5 // pred_region
        %s255 = ssub.s32 %s19, 1
        %p256 = scmp.lt.s32.totalorder %s28, 1
        %s257 = scalar_select %p256, %s28, 1
        %p258 = scmp.lt.s32.totalorder %s29, 0
        %s259 = scalar_select %p258, %s29, 0
        %s260 = sadd.s32 %s259, %s257
        %s261 = smul.addr %s260, 2
        %s262 = scalar_lea.vmem %s0, %s261
        %p263 = pneg %p59
        %p264 = pneg %p56
        %p265 = pneg %p80
        %p266 = pneg %p77
        %p267 = pneg %p101
        %p268 = pneg %p98
        %p269 = pneg %p122
        %p270 = pneg %p119
        %p271 = scmp.lt.s32.totalorder %s29, 0
        %s272 = scalar_select %p271, %s29, 0
        %s273 = smul.addr %s272, 2
        %s274 = scalar_lea.vmem %s4, %s273
        %p275 = pneg %p148
        %p276 = pneg %p145
        %p277 = pneg %p176
        %p278 = pneg %p173
        %s279 = sand.u32 %s163, 1
        %s280 = scalar_lea.sflag [#allocation3], %s279
        %s281 = sand.u32 %s163, 1
        %s282 = smul.addr %s281, 48
        %s283 = scalar_lea.vmem [#allocation2], %s282
        %p284 = pneg %p204
        %p285 = pneg %p201
        %s286 = sand.u32 %s191, 1
        %s287 = scalar_lea.sflag [#allocation5], %s286
        %s288 = sand.u32 %s191, 1
        %s289 = smul.addr %s288, 48
        %s290 = scalar_lea.vmem [#allocation4], %s289
        %p291 = scmp.lt.s32.totalorder %s28, 1
        %s292 = scalar_select %p291, %s28, 1
        %p293 = scmp.lt.s32.totalorder %s29, 0
        %s294 = scalar_select %p293, %s29, 0
        %s295 = sadd.s32 %s294, %s292
        %s296 = smul.addr %s295, 2
        %s297 = scalar_lea.vmem %s0, %s296
        %p298 = scmp.lt.s32.totalorder %s29, 0
        %s299 = scalar_select %p298, %s29, 0
        %s300 = smul.addr %s299, 2
        %s301 = scalar_lea.vmem %s4, %s300
        %v303 = vld [vmem:[%s1] sm:$0xf]
        %v304 = vld [vmem:[%s1 + $0x4] sm:$0xf]
        %v305 = vld [vmem:[%s1 + $0x8] sm:$0xf]
        %v306 = vld [vmem:[%s1 + $0xc] sm:$0xf]
        %v307 = vld [vmem:[%s1 + $0x10] sm:$0xf]
        %v308 = vld [vmem:[%s1 + $0x14] sm:$0xf]
        %v309 = vld [vmem:[%s297] sm:$0x3]
        %v310 = vld [vmem:[%s2] sm:$0xff]
        %v311 = vld [vmem:[%s2 + $0x8] sm:$0xff]
        %v312 = vld [vmem:[%s2 + $0x10] sm:$0xff]
        %v313 = vld [vmem:[%s2 + $0x18] sm:$0xff]
        %v314 = vld [vmem:[%s2 + $0x20] sm:$0xff]
        %v315 = vld [vmem:[%s2 + $0x28] sm:$0xff]
        %317 = vset.pattern.permute.xlu0 0
        %318 = vperm.xlu0 %317, %v310
        %v319 = vpop.permute.xlu0 %318
        %322 = vset.pattern.permute.xlu0 0
        %323 = vperm.xlu0 %322, %v311
        %v324 = vpop.permute.xlu0 %323
        %327 = vset.pattern.permute.xlu0 0
        %328 = vperm.xlu0 %327, %v312
        %v329 = vpop.permute.xlu0 %328
        %332 = vset.pattern.permute.xlu0 0
        %333 = vperm.xlu0 %332, %v313
        %v334 = vpop.permute.xlu0 %333
        %337 = vset.pattern.permute.xlu0 0
        %338 = vperm.xlu0 %337, %v314
        %v339 = vpop.permute.xlu0 %338
        %342 = vset.pattern.permute.xlu0 0
        %343 = vperm.xlu0 %342, %v315
        %v344 = vpop.permute.xlu0 %343
        %v352 = vunpack.c.l.b16 %v303
        %v353 = vunpack.c.l.b16 %v304
        %v354 = vunpack.c.l.b16 %v305
        %v355 = vunpack.c.l.b16 %v306
        %v356 = vunpack.c.l.b16 %v307
        %v357 = vunpack.c.l.b16 %v308
        %v358 = vpack.c.b16 %v353, %v352
        %v359 = vpack.c.b16 %v355, %v354
        %v360 = vpack.c.b16 %v357, %v356
        %vm361 = vcmask 31744
        %v363 = vsel %vm361, %v358, 0
        %v366 = vsel %vm361, %v359, 0
        %v369 = vsel %vm361, %v360, 0
        %vm371 = vcmask 1041408
        %v373 = vsel %vm371, %v309, 0
        %375 = vmatprep.subr.bf16.mxu0 0
        %376 = vmatpush1.bf16.msra.mxu0 0
        %377 = vmatprep.subr.bf16.mxu0 0
        %378 = vmatpush1.bf16.msra.mxu0 0
        %379 = vmatprep.subr.bf16.mxu0 0
        %380 = vmatpush1.bf16.msra.mxu0 0
        %381 = vmatprep.subr.bf16.mxu0 0
        %382 = vmatpush1.bf16.msra.mxu0 0
        %383 = vmatprep.subr.bf16.mxu0 0
        %384 = vmatpush1.bf16.msra.mxu0 0
        %385 = vmatprep.subr.bf16.mxu0 0
        %386 = vmatpush1.bf16.msra.mxu0 0
        %387 = vmatprep.subr.bf16.mxu0 0
        %388 = vmatpush1.bf16.msra.mxu0 0
        %389 = vmatprep.subr.bf16.mxu0 0
        %390 = vmatpush1.bf16.msra.mxu0 %v373
        %391 = vmatprep.subr.bf16.mxu0 0
        %392 = vmatpush2.bf16.msra.mxu0 0
        %393 = vmatprep.subr.bf16.mxu0 0
        %394 = vmatpush2.bf16.msra.mxu0 0
        %395 = vmatprep.subr.bf16.mxu0 0
        %396 = vmatpush2.bf16.msra.mxu0 0
        %397 = vmatprep.subr.bf16.mxu0 0
        %398 = vmatpush2.bf16.msra.mxu0 0
        %399 = vmatprep.subr.bf16.mxu0 0
        %400 = vmatpush2.bf16.msra.mxu0 0
        %401 = vmatprep.subr.bf16.mxu0 0
        %402 = vmatpush2.bf16.msra.mxu0 0
        %403 = vmatprep.subr.bf16.mxu0 0
        %404 = vmatpush2.bf16.msra.mxu0 0
        %405 = vmatprep.subr.bf16.mxu0 0
        %406 = vmatpush2.bf16.msra.mxu0 0
        %407 = vmatprep.mubr.bf16.mxu0 0
        %408 = vmatmul.mubr.bf16.gmra.mxu0 %v363
        %v409 = vpop.f32.mrf.mxu0
        %v410 = vadd.f32 %v319, %v409
        %v411 = vpop.f32.mrf.mxu0
        %v412 = vpop.f32.mrf.mxu0
        %v413 = vadd.f32 %v324, %v412
        %v414 = vpop.f32.mrf.mxu0
        %415 = vmatprep.mubr.bf16.mxu0 0
        %416 = vmatmul.mubr.bf16.gmra.mxu0 %v366
        %v417 = vpop.f32.mrf.mxu0
        %v418 = vadd.f32 %v329, %v417
        %v419 = vpop.f32.mrf.mxu0
        %v420 = vpop.f32.mrf.mxu0
        %v421 = vadd.f32 %v334, %v420
        %v422 = vpop.f32.mrf.mxu0
        %423 = vmatprep.mubr.bf16.mxu0 0
        %424 = vmatmul.mubr.bf16.gmra.mxu0 %v369
        %v425 = vpop.f32.mrf.mxu0
        %v426 = vadd.f32 %v339, %v425
        %v427 = vpop.f32.mrf.mxu0
        %v428 = vpop.f32.mrf.mxu0
        %v429 = vadd.f32 %v344, %v428
        %v430 = vpop.f32.mrf.mxu0
        %431 = vdwg.mxu0
        %vm432 = vcmask 523264
        %433 = vst.msk [vmem:[%s283] sm:$0xff] %vm432, %v410
        %434 = vst.msk [vmem:[%s283 + $0x8] sm:$0xff] %vm432, %v413
        %435 = vst.msk [vmem:[%s283 + $0x10] sm:$0xff] %vm432, %v418
        %436 = vst.msk [vmem:[%s283 + $0x18] sm:$0xff] %vm432, %v421
        %437 = vst.msk [vmem:[%s283 + $0x20] sm:$0xff] %vm432, %v426
        %438 = vst.msk [vmem:[%s283 + $0x28] sm:$0xff] %vm432, %v429
        %v439 = vsub.f32 0.0, %v410
        %v440 = vsub.f32 0.0, %v413
        %v441 = vsub.f32 0.0, %v418
        %v442 = vsub.f32 0.0, %v421
        %v443 = vsub.f32 0.0, %v426
        %v444 = vsub.f32 0.0, %v429
        %v445 = vmul.f32 %v439, 1.442695
        %v446 = vpow.pop %v445
        %v447 = vmul.f32 %v440, 1.442695
        %v448 = vpow.pop %v447
        %v449 = vmul.f32 %v441, 1.442695
        %v450 = vpow.pop %v449
        %v451 = vmul.f32 %v442, 1.442695
        %v452 = vpow.pop %v451
        %v453 = vmul.f32 %v443, 1.442695
        %v454 = vpow.pop %v453
        %v455 = vmul.f32 %v444, 1.442695
        %v456 = vpow.pop %v455
        %v457 = vadd.f32 %v446, 1.0
        %v458 = vadd.f32 %v448, 1.0
        %v459 = vadd.f32 %v450, 1.0
        %v460 = vadd.f32 %v452, 1.0
        %v461 = vadd.f32 %v454, 1.0
        %v462 = vadd.f32 %v456, 1.0
        %v463 = vrcp.pop %v457
        %v464 = vrcp.pop %v458
        %v465 = vrcp.pop %v459
        %v466 = vrcp.pop %v460
        %v467 = vrcp.pop %v461
        %v468 = vrcp.pop %v462
        %v469 = vld [vmem:[%s301] sm:$0x1]
        %v470 = vld [vmem:[%s301 + $0x1] sm:$0x1]
        %v471 = vld [vmem:[%s3] sm:$0xff]
        %v472 = vld [vmem:[%s3 + $0x8] sm:$0xff]
        %v473 = vld [vmem:[%s3 + $0x10] sm:$0xff]
        %v474 = vld [vmem:[%s3 + $0x18] sm:$0xff]
        %v475 = vld [vmem:[%s3 + $0x20] sm:$0xff]
        %v476 = vld [vmem:[%s3 + $0x28] sm:$0xff]
        %478 = vset.pattern.permute.xlu0 0
        %479 = vperm.xlu0 %478, %v471
        %v480 = vpop.permute.xlu0 %479
        %483 = vset.pattern.permute.xlu0 0
        %484 = vperm.xlu0 %483, %v472
        %v485 = vpop.permute.xlu0 %484
        %488 = vset.pattern.permute.xlu0 0
        %489 = vperm.xlu0 %488, %v473
        %v490 = vpop.permute.xlu0 %489
        %493 = vset.pattern.permute.xlu0 0
        %494 = vperm.xlu0 %493, %v474
        %v495 = vpop.permute.xlu0 %494
        %498 = vset.pattern.permute.xlu0 0
        %499 = vperm.xlu0 %498, %v475
        %v500 = vpop.permute.xlu0 %499
        %503 = vset.pattern.permute.xlu0 0
        %504 = vperm.xlu0 %503, %v476
        %v505 = vpop.permute.xlu0 %504
        %v507 = vmul.f32 %v480, %v463
        %v508 = vmul.f32 %v485, %v464
        %v509 = vmul.f32 %v490, %v465
        %v510 = vmul.f32 %v495, %v466
        %v511 = vmul.f32 %v500, %v467
        %v512 = vmul.f32 %v505, %v468
        %v513 = vmul.f32 %v463, %v463
        %v514 = vmul.f32 %v464, %v464
        %v515 = vmul.f32 %v465, %v465
        %v516 = vmul.f32 %v466, %v466
        %v517 = vmul.f32 %v467, %v467
        %v518 = vmul.f32 %v468, %v468
        %519 = vset.pattern.permute.xlu0 1
        %520 = vperm.xlu0 %519, %v471
        %v521 = vpop.permute.xlu0 %520
        %523 = vset.pattern.permute.xlu0 1
        %524 = vperm.xlu0 %523, %v472
        %v525 = vpop.permute.xlu0 %524
        %527 = vset.pattern.permute.xlu0 1
        %528 = vperm.xlu0 %527, %v473
        %v529 = vpop.permute.xlu0 %528
        %531 = vset.pattern.permute.xlu0 1
        %532 = vperm.xlu0 %531, %v474
        %v533 = vpop.permute.xlu0 %532
        %535 = vset.pattern.permute.xlu0 1
        %536 = vperm.xlu0 %535, %v475
        %v537 = vpop.permute.xlu0 %536
        %539 = vset.pattern.permute.xlu0 1
        %540 = vperm.xlu0 %539, %v476
        %v541 = vpop.permute.xlu0 %540
        %v543 = vmul.f32 %v521, %v513
        %v544 = vmul.f32 %v525, %v514
        %v545 = vmul.f32 %v529, %v515
        %v546 = vmul.f32 %v533, %v516
        %v547 = vmul.f32 %v537, %v517
        %v548 = vmul.f32 %v541, %v518
        %v549 = vadd.f32 %v507, %v543
        %v550 = vadd.f32 %v508, %v544
        %v551 = vadd.f32 %v509, %v545
        %v552 = vadd.f32 %v510, %v546
        %v553 = vadd.f32 %v511, %v547
        %v554 = vadd.f32 %v512, %v548
        %555 = vset.pattern.permute.xlu0 2
        %556 = vperm.xlu0 %555, %v471
        %v557 = vpop.permute.xlu0 %556
        %559 = vset.pattern.permute.xlu0 2
        %560 = vperm.xlu0 %559, %v472
        %v561 = vpop.permute.xlu0 %560
        %563 = vset.pattern.permute.xlu0 2
        %564 = vperm.xlu0 %563, %v473
        %v565 = vpop.permute.xlu0 %564
        %567 = vset.pattern.permute.xlu0 2
        %568 = vperm.xlu0 %567, %v474
        %v569 = vpop.permute.xlu0 %568
        %571 = vset.pattern.permute.xlu0 2
        %572 = vperm.xlu0 %571, %v475
        %v573 = vpop.permute.xlu0 %572
        %575 = vset.pattern.permute.xlu0 2
        %576 = vperm.xlu0 %575, %v476
        %v577 = vpop.permute.xlu0 %576
        %v579 = vmul.f32 %v557, %v410
        %v580 = vmul.f32 %v561, %v413
        %v581 = vmul.f32 %v565, %v418
        %v582 = vmul.f32 %v569, %v421
        %v583 = vmul.f32 %v573, %v426
        %v584 = vmul.f32 %v577, %v429
        %v585 = vadd.f32 %v549, %v579
        %v586 = vadd.f32 %v550, %v580
        %v587 = vadd.f32 %v551, %v581
        %v588 = vadd.f32 %v552, %v582
        %v589 = vadd.f32 %v553, %v583
        %v590 = vadd.f32 %v554, %v584
        %591 = vset.pattern.permute.xlu0 3
        %592 = vperm.xlu0 %591, %v471
        %v593 = vpop.permute.xlu0 %592
        %595 = vset.pattern.permute.xlu0 3
        %596 = vperm.xlu0 %595, %v472
        %v597 = vpop.permute.xlu0 %596
        %599 = vset.pattern.permute.xlu0 3
        %600 = vperm.xlu0 %599, %v473
        %v601 = vpop.permute.xlu0 %600
        %603 = vset.pattern.permute.xlu0 3
        %604 = vperm.xlu0 %603, %v474
        %v605 = vpop.permute.xlu0 %604
        %607 = vset.pattern.permute.xlu0 3
        %608 = vperm.xlu0 %607, %v475
        %v609 = vpop.permute.xlu0 %608
        %611 = vset.pattern.permute.xlu0 3
        %612 = vperm.xlu0 %611, %v476
        %v613 = vpop.permute.xlu0 %612
        %v615 = vlaneseq
        %v616 = vshrl.u32 %v615, 7
        %v617 = vsub.s32 0, %v616
        %v618 = vrot.slane %v469, %v617
        %v619 = vmul.f32 %v593, %v618
        %v620 = vmul.f32 %v597, %v618
        %v621 = vmul.f32 %v601, %v618
        %v622 = vmul.f32 %v605, %v618
        %v623 = vmul.f32 %v609, %v618
        %v624 = vmul.f32 %v613, %v618
        %v625 = vadd.f32 %v585, %v619
        %v626 = vadd.f32 %v586, %v620
        %v627 = vadd.f32 %v587, %v621
        %v628 = vadd.f32 %v588, %v622
        %v629 = vadd.f32 %v589, %v623
        %v630 = vadd.f32 %v590, %v624
        %631 = vset.pattern.permute.xlu0 4
        %632 = vperm.xlu0 %631, %v471
        %v633 = vpop.permute.xlu0 %632
        %635 = vset.pattern.permute.xlu0 4
        %636 = vperm.xlu0 %635, %v472
        %v637 = vpop.permute.xlu0 %636
        %639 = vset.pattern.permute.xlu0 4
        %640 = vperm.xlu0 %639, %v473
        %v641 = vpop.permute.xlu0 %640
        %643 = vset.pattern.permute.xlu0 4
        %644 = vperm.xlu0 %643, %v474
        %v645 = vpop.permute.xlu0 %644
        %647 = vset.pattern.permute.xlu0 4
        %648 = vperm.xlu0 %647, %v475
        %v649 = vpop.permute.xlu0 %648
        %651 = vset.pattern.permute.xlu0 4
        %652 = vperm.xlu0 %651, %v476
        %v653 = vpop.permute.xlu0 %652
        %v655 = vlaneseq
        %v656 = vshrl.u32 %v655, 7
        %v657 = vsub.s32 0, %v656
        %v658 = vrot.slane %v470, %v657
        %v659 = vmul.f32 %v633, %v658
        %v660 = vmul.f32 %v637, %v658
        %v661 = vmul.f32 %v641, %v658
        %v662 = vmul.f32 %v645, %v658
        %v663 = vmul.f32 %v649, %v658
        %v664 = vmul.f32 %v653, %v658
        %v665 = vadd.f32 %v625, %v659
        %v666 = vadd.f32 %v626, %v660
        %v667 = vadd.f32 %v627, %v661
        %v668 = vadd.f32 %v628, %v662
        %v669 = vadd.f32 %v629, %v663
        %v670 = vadd.f32 %v630, %v664
        %671 = vset.pattern.permute.xlu0 5
        %672 = vperm.xlu0 %671, %v471
        %v673 = vpop.permute.xlu0 %672
        %675 = vset.pattern.permute.xlu0 5
        %676 = vperm.xlu0 %675, %v472
        %v677 = vpop.permute.xlu0 %676
        %679 = vset.pattern.permute.xlu0 5
        %680 = vperm.xlu0 %679, %v473
        %v681 = vpop.permute.xlu0 %680
        %683 = vset.pattern.permute.xlu0 5
        %684 = vperm.xlu0 %683, %v474
        %v685 = vpop.permute.xlu0 %684
        %687 = vset.pattern.permute.xlu0 5
        %688 = vperm.xlu0 %687, %v475
        %v689 = vpop.permute.xlu0 %688
        %691 = vset.pattern.permute.xlu0 5
        %692 = vperm.xlu0 %691, %v476
        %v693 = vpop.permute.xlu0 %692
        %v695 = vadd.f32 %v665, %v673
        %v696 = vadd.f32 %v666, %v677
        %v697 = vadd.f32 %v667, %v681
        %v698 = vadd.f32 %v668, %v685
        %v699 = vadd.f32 %v669, %v689
        %v700 = vadd.f32 %v670, %v693
        %701 = vst.msk [vmem:[%s290] sm:$0xff] %vm432, %v695
        %702 = vst.msk [vmem:[%s290 + $0x8] sm:$0xff] %vm432, %v696
        %703 = vst.msk [vmem:[%s290 + $0x10] sm:$0xff] %vm432, %v697
        %704 = vst.msk [vmem:[%s290 + $0x18] sm:$0xff] %vm432, %v698
        %705 = vst.msk [vmem:[%s290 + $0x20] sm:$0xff] %vm432, %v699
        %706 = vst.msk [vmem:[%s290 + $0x28] sm:$0xff] %vm432, %v700
        %s707 = sand.u32 %s163, 1
        %s708 = scalar_lea.sflag [#allocation3], %s707
        %s709 = sand.u32 %s163, 1
        %s710 = smul.addr %s709, 48
        %s711 = scalar_lea.vmem [#allocation2], %s710
        %s712 = sand.u32 %s191, 1
        %s713 = scalar_lea.sflag [#allocation5], %s712
        %s714 = sand.u32 %s191, 1
        %s715 = smul.addr %s714, 48
        %s716 = scalar_lea.vmem [#allocation4], %s715
        // Predicated region
        $region41: #{tpu_custom_call.1} parent=39 // pred_check
          %p717 = pneg %p173
        $region42: #{tpu_custom_call.1} parent=39 // pred_check_branch
          %719 = sbr.rel (%p717) target = $region44
        $region43: #{tpu_custom_call.1} parent=39 // pred_region
          %s721 = ssub.s32 768, 768
          %722 = vsyncadd %s708, %s721
          %s723 = smul.addr %s28, 6
          %s724 = sadd.s32 %s29, %s723
          %s725 = smul.addr %s724, 128
          %s726 = scalar_lea.hbm %s5, %s725
          %s727 = sshll.u32 %s711, 4
          %s728 = int_to_ptr.vmem [resolvable:$true] %s727
          %733 = dma.vmem_to_hbm [thread:$0]  %s728, 768, %s726, %s708, 128, 128, 8
        $region44: #{tpu_custom_call.1} parent=39 // pred_fallthru
          _
        // Predicated region
        $region45: #{tpu_custom_call.1} parent=39 // pred_check
          %p734 = pneg %p201
        $region46: #{tpu_custom_call.1} parent=39 // pred_check_branch
          %736 = sbr.rel (%p734) target = $region48
        $region47: #{tpu_custom_call.1} parent=39 // pred_region
          %s738 = ssub.s32 768, 768
          %739 = vsyncadd %s713, %s738
          %s740 = smul.addr %s28, 6
          %s741 = sadd.s32 %s29, %s740
          %s742 = smul.addr %s741, 128
          %s743 = scalar_lea.hbm %s6, %s742
          %s744 = sshll.u32 %s716, 4
          %s745 = int_to_ptr.vmem [resolvable:$true] %s744
          %750 = dma.vmem_to_hbm [thread:$0]  %s745, 768, %s743, %s713, 128, 128, 8
        $region48: #{tpu_custom_call.1} parent=39 // pred_fallthru
          _
      $region40: #{tpu_custom_call.1} parent=5 // pred_fallthru
        _
      %p751 = scmp.le.s32.totalorder 2, %s19
      // Predicated region
      $region49: #{tpu_custom_call.1} parent=5 // pred_check
        %p752 = pneg %p751
      $region50: #{tpu_custom_call.1} parent=5 // pred_check_branch
        %754 = sbr.rel (%p752) target = $region52
      $region51: #{tpu_custom_call.1} parent=5 // pred_region
        %s755 = ssub.s32 %s19, 2
        // Predicated region
        $region53: #{tpu_custom_call.1} parent=51 // pred_check
          %p756 = pneg %p179
        $region54: #{tpu_custom_call.1} parent=51 // pred_check_branch
          %758 = sbr.rel (%p756) target = $region56
        $region55: #{tpu_custom_call.1} parent=51 // pred_region
          %s759 = sand.u32 %s164, 1
          %s760 = scalar_lea.sflag [#allocation3], %s759
          %s761 = sand.u32 %s164, 1
          %s762 = smul.addr %s761, 48
          %s763 = scalar_lea.vmem [#allocation2], %s762
          %764 = dma.done %s760, 768
        $region56: #{tpu_custom_call.1} parent=51 // pred_fallthru
          _
        // Predicated region
        $region57: #{tpu_custom_call.1} parent=51 // pred_check
          %p765 = pneg %p207
        $region58: #{tpu_custom_call.1} parent=51 // pred_check_branch
          %767 = sbr.rel (%p765) target = $region60
        $region59: #{tpu_custom_call.1} parent=51 // pred_region
          %s768 = sand.u32 %s192, 1
          %s769 = scalar_lea.sflag [#allocation5], %s768
          %s770 = sand.u32 %s192, 1
          %s771 = smul.addr %s770, 48
          %s772 = scalar_lea.vmem [#allocation4], %s771
          %773 = dma.done %s769, 768
        $region60: #{tpu_custom_call.1} parent=51 // pred_fallthru
          _
      $region52: #{tpu_custom_call.1} parent=5 // pred_fallthru
        _
    $region6: #{tpu_custom_call.1} parent=1 // loop_footer
      %s23 = sadd.s32 1, %s19
    $region7: #{tpu_custom_call.1} parent=1 // loop_footer_branch
      %18 = sbr.rel target = $region3
    $region8: #{tpu_custom_call.1} parent=1 // loop_exit
      _
    %774 = vsyncpa [#allocation3], 1
    %s775 = scalar_lea.sflag [#allocation3], 1
    %776 = vsyncpa %s775, 1
    %777 = vsyncpa [#allocation5], 1
    %s778 = scalar_lea.sflag [#allocation5], 1
    %779 = vsyncpa %s778, 1

</llo_original>
